<compile_context>
chip_gen: v6e
topology: v6e:2x2x1
jax: 0.10.0
libtpu: 0.0.40
codegen_flags: <defaults>
</compile_context>

<pallas_src>
import math
from functools import partial

import numpy as np
import jax
import jax.numpy as jnp
from jax.experimental import pallas as pl
from jax.experimental.pallas import tpu as pltpu


# Safe on v5e/v6e (128 MiB physical VMEM) and v7x (64 MiB physical VMEM).
_VMEM_LIMIT = 48 * 1024 * 1024


# ----------------------------------------------------------------------------
# Pallas kernels
# ----------------------------------------------------------------------------

def _make_matmul_bn_act_kernel(relu: bool, has_res: bool):
    """Fused  out = act( (A @ W) * scale + bias [+ residual] ).

    Grid = (M tiles, N tiles, K reduction).  acc scratch is (bm, bn) f32 and is
    re-initialised at k==0, finalised (BN affine / residual / ReLU, cast to the
    output dtype) at the last K step.
    """
    def kernel(*refs):
        if has_res:
            a_ref, w_ref, s_ref, b_ref, r_ref, o_ref, acc_ref = refs
        else:
            a_ref, w_ref, s_ref, b_ref, o_ref, acc_ref = refs
            r_ref = None

        k = pl.program_id(2)

        @pl.when(k == 0)
        def _():
            acc_ref[...] = jnp.zeros_like(acc_ref)

        acc_ref[...] += jnp.dot(a_ref[...], w_ref[...],
                                preferred_element_type=jnp.float32)

        @pl.when(k == pl.num_programs(2) - 1)
        def _():
            y = acc_ref[...] * s_ref[...] + b_ref[...]
            if r_ref is not None:
                y = y + r_ref[...].astype(jnp.float32)
            if relu:
                y = jnp.maximum(y, 0.0)
            o_ref[...] = y.astype(o_ref.dtype)

    return kernel


def _make_max_kernel(n_taps: int):
    """Elementwise max over n_taps row-tiled [bm, C] inputs."""
    def kernel(*refs):
        o_ref = refs[n_taps]
        m = refs[0][...]
        for i in range(1, n_taps):
            m = jnp.maximum(m, refs[i][...])
        o_ref[...] = m
    return kernel


def _avg_pool_kernel(x_ref, o_ref):
    """Mean over axis 1 of a [B, HW, bc] block (global average pool), f32 accum."""
    x = x_ref[...].astype(jnp.float32)
    o_ref[...] = jnp.mean(x, axis=1).astype(o_ref.dtype)


# ----------------------------------------------------------------------------
# Helpers
# ----------------------------------------------------------------------------

def _round_up(x, m):
    return ((x + m - 1) // m) * m


def _pick_block(dim, max_b):
    """Largest multiple of 128 that divides `dim` (a multiple of 128) and <= max_b."""
    assert dim % 128 == 0, dim
    b = min(max_b, dim)
    b = (b // 128) * 128
    while dim % b:
        b -= 128
    assert b >= 128
    return b


# ----------------------------------------------------------------------------
# Pallas call wrappers
# ----------------------------------------------------------------------------

def _matmul_bn_act(a, w, scale, bias, residual, *, relu, out_dtype=jnp.bfloat16):
    """a:[M,K], w:[K,N], scale/bias:[1,N] f32, residual:[M,N] or None -> [M,N]."""
    M, K = a.shape
    N = w.shape[1]

    Kp = _round_up(K, 128)
    Np = _round_up(N, 128)
    bk = _pick_block(Kp, 512)
    bn = _pick_block(Np, 512)

    # M tiling: stream M in >=256-wide tiles instead of keeping all rows resident.
    if M <= 512:
        bm = _round_up(M, 8)
        Mp = bm
    else:
        bm = 512
        Mp = _round_up(M, bm)

    # bf16 operands for the MXU; accumulation stays f32 in the kernel.
    a = a.astype(jnp.bfloat16)
    w = w.astype(jnp.bfloat16)
    if (Mp, Kp) != (M, K):
        a = jnp.pad(a, ((0, Mp - M), (0, Kp - K)))
    if (Kp, Np) != (K, N):
        w = jnp.pad(w, ((0, Kp - K), (0, Np - N)))
    if Np != N:
        scale = jnp.pad(scale, ((0, 0), (0, Np - N)))
        bias = jnp.pad(bias, ((0, 0), (0, Np - N)))

    has_res = residual is not None
    args = [a, w, scale, bias]
    in_specs = [
        pl.BlockSpec((bm, bk), lambda m, n, k: (m, k)),
        pl.BlockSpec((bk, bn), lambda m, n, k: (k, n)),
        pl.BlockSpec((1, bn), lambda m, n, k: (0, n)),
        pl.BlockSpec((1, bn), lambda m, n, k: (0, n)),
    ]
    if has_res:
        residual = residual.astype(jnp.bfloat16)
        if residual.shape != (Mp, Np):
            residual = jnp.pad(residual, ((0, Mp - M), (0, Np - N)))
        args.append(residual)
        in_specs.append(pl.BlockSpec((bm, bn), lambda m, n, k: (m, n)))

    grid = (Mp // bm, Np // bn, Kp // bk)

    out = pl.pallas_call(
        _make_matmul_bn_act_kernel(relu, has_res),
        out_shape=jax.ShapeDtypeStruct((Mp, Np), out_dtype),
        grid_spec=pltpu.PrefetchScalarGridSpec(
            num_scalar_prefetch=0,
            grid=grid,
            in_specs=in_specs,
            out_specs=pl.BlockSpec((bm, bn), lambda m, n, k: (m, n)),
            scratch_shapes=[pltpu.VMEM((bm, bn), jnp.float32)],
        ),
        compiler_params=pltpu.CompilerParams(
            dimension_semantics=("parallel", "parallel", "arbitrary"),
            vmem_limit_bytes=_VMEM_LIMIT,
        ),
    )(*args)
    return out[:M, :N]


def _im2col(x, kh, kw, stride, pad):
    """NHWC -> ([B*OH*OW, kh*kw*C], OH, OW). Patch channel order = (kh, kw, cin)."""
    B, H, W, C = x.shape
    if pad:
        x = jnp.pad(x, ((0, 0), (pad, pad), (pad, pad), (0, 0)))
    OH = (H + 2 * pad - kh) // stride + 1
    OW = (W + 2 * pad - kw) // stride + 1
    cols = []
    for i in range(kh):
        for j in range(kw):
            cols.append(x[:, i:i + stride * OH:stride, j:j + stride * OW:stride, :])
    patches = jnp.concatenate(cols, axis=-1)  # [B, OH, OW, kh*kw*C]
    return patches.reshape(B * OH * OW, kh * kw * C), OH, OW


@partial(jax.jit, static_argnames=("stride", "relu"))
def conv_bn(x, w, scale, bias, residual=None, *, stride, relu):
    """Conv2d (no bias) + folded-BN affine + optional residual + optional ReLU.

    x: [B, H, W, Cin] NHWC (bf16).  w: [kh, kw, Cin, Cout] HWIO (bf16).
    scale/bias: [1, Cout] f32.  residual: [B, OH, OW, Cout] or None.
    Returns bf16 [B, OH, OW, Cout].
    """
    B = x.shape[0]
    kh, kw, cin, cout = w.shape
    if kh == 1 and kw == 1:
        # 1x1 conv: no im2col / no duplication — just (optional) stride subsample.
        if stride > 1:
            x = x[:, ::stride, ::stride, :]
        OH, OW = x.shape[1], x.shape[2]
        a = x.reshape(B * OH * OW, cin)
    else:
        a, OH, OW = _im2col(x, kh, kw, stride, kh // 2)
    wm = w.reshape(kh * kw * cin, cout)
    res2d = None if residual is None else residual.reshape(B * OH * OW, cout)
    out2d = _matmul_bn_act(a, wm, scale, bias, res2d, relu=relu)
    return out2d.reshape(B, OH, OW, cout)


@jax.jit
def maxpool_3x3_s2(x):
    """3x3 stride-2 pad-1 max pool (NHWC), row-tiled Pallas reduction over 9 taps."""
    B, H, W, C = x.shape
    k, stride, pad = 3, 2, 1
    OH = (H + 2 * pad - k) // stride + 1
    OW = (W + 2 * pad - k) // stride + 1
    neg = jnp.finfo(x.dtype).min
    xp = jnp.pad(x, ((0, 0), (pad, pad), (pad, pad), (0, 0)), constant_values=neg)
    taps = [xp[:, i:i + stride * OH:stride, j:j + stride * OW:stride, :]
            .reshape(B * OH * OW, C)
            for i in range(k) for j in range(k)]

    M = B * OH * OW
    bm = min(1024, _round_up(M, 8))
    Mp = _round_up(M, bm)
    if Mp != M:
        taps = [jnp.pad(t, ((0, Mp - M), (0, 0)), constant_values=neg) for t in taps]

    out = pl.pallas_call(
        _make_max_kernel(k * k),
        out_shape=jax.ShapeDtypeStruct((Mp, C), x.dtype),
        grid=(Mp // bm,),
        in_specs=[pl.BlockSpec((bm, C), lambda m: (m, 0)) for _ in range(k * k)],
        out_specs=pl.BlockSpec((bm, C), lambda m: (m, 0)),
        compiler_params=pltpu.CompilerParams(
            dimension_semantics=("parallel",),
            vmem_limit_bytes=_VMEM_LIMIT,
        ),
    )(*taps)
    return out[:M].reshape(B, OH, OW, C)


@jax.jit
def global_avg_pool(x):
    """Global average pool over spatial dims (NHWC) -> [B, C] f32, channel-tiled."""
    B, H, W, C = x.shape
    hw = H * W
    xr = x.reshape(B, hw, C)
    Cp = _round_up(C, 128)
    if Cp != C:
        xr = jnp.pad(xr, ((0, 0), (0, 0), (0, Cp - C)))
    bc = _pick_block(Cp, 512)

    out = pl.pallas_call(
        _avg_pool_kernel,
        out_shape=jax.ShapeDtypeStruct((B, Cp), jnp.float32),
        grid=(Cp // bc,),
        in_specs=[pl.BlockSpec((B, hw, bc), lambda c: (0, 0, c))],
        out_specs=pl.BlockSpec((B, bc), lambda c: (0, c)),
        compiler_params=pltpu.CompilerParams(
            dimension_semantics=("parallel",),
            vmem_limit_bytes=_VMEM_LIMIT,
        ),
    )(xr)
    return out[:, :C]


# ----------------------------------------------------------------------------
# ResNet-152 (timm `resnet152`, num_classes=0, global_pool='avg')
# ----------------------------------------------------------------------------

def _he_conv(rng, kh, kw, cin, cout):
    std = math.sqrt(2.0 / (kh * kw * cin))
    w = rng.standard_normal((kh, kw, cin, cout)).astype(np.float32) * std
    return jnp.asarray(w, dtype=jnp.bfloat16)


def _bn_folded(rng, c, eps=1e-5):
    gamma = (1.0 + 0.1 * rng.standard_normal(c)).astype(np.float32)
    beta = (0.1 * rng.standard_normal(c)).astype(np.float32)
    mean = np.zeros(c, np.float32)
    var = np.ones(c, np.float32)
    scale = gamma / np.sqrt(var + eps)
    bias = beta - mean * scale
    return jnp.asarray(scale.reshape(1, c)), jnp.asarray(bias.reshape(1, c))


def build_resnet152_params(seed=0):
    rng = np.random.default_rng(seed)
    params = {}
    # stem: 7x7 s2 conv, 3->64, + BN
    params["stem_w"] = _he_conv(rng, 7, 7, 3, 64)
    params["stem_s"], params["stem_b"] = _bn_folded(rng, 64)

    # bottleneck stages: (planes, num_blocks, stride), expansion 4 -> [3, 8, 36, 3]
    cfg = [(64, 3, 1), (128, 8, 2), (256, 36, 2), (512, 3, 2)]
    layers = []
    cin = 64
    for planes, nblocks, stride in cfg:
        blocks = []
        for b in range(nblocks):
            s = stride if b == 0 else 1
            blk = {"stride": s}
            blk["w1"] = _he_conv(rng, 1, 1, cin, planes)
            blk["s1"], blk["b1"] = _bn_folded(rng, planes)
            blk["w2"] = _he_conv(rng, 3, 3, planes, planes)
            blk["s2"], blk["b2"] = _bn_folded(rng, planes)
            blk["w3"] = _he_conv(rng, 1, 1, planes, planes * 4)
            blk["s3"], blk["b3"] = _bn_folded(rng, planes * 4)
            if b == 0:  # projection shortcut (1x1, stride s)
                blk["dw"] = _he_conv(rng, 1, 1, cin, planes * 4)
                blk["ds"], blk["db"] = _bn_folded(rng, planes * 4)
            blocks.append(blk)
            cin = planes * 4
        layers.append(blocks)
    params["layers"] = layers
    return params


def bottleneck(x, blk):
    stride = blk["stride"]
    if "dw" in blk:
        sc = conv_bn(x, blk["dw"], blk["ds"], blk["db"], None, stride=stride, relu=False)
    else:
        sc = x
    out = conv_bn(x, blk["w1"], blk["s1"], blk["b1"], None, stride=1, relu=True)
    out = conv_bn(out, blk["w2"], blk["s2"], blk["b2"], None, stride=stride, relu=True)
    out = conv_bn(out, blk["w3"], blk["s3"], blk["b3"], sc, stride=1, relu=True)
    return out


def image_encoder_resnet152_forward(params, x_nchw):
    """Equivalent of ImageEncoder_resnet152.forward: NCHW image -> [B, 2048] features."""
    x = jnp.transpose(x_nchw, (0, 2, 3, 1)).astype(jnp.bfloat16)  # NCHW -> NHWC bf16
    x = conv_bn(x, params["stem_w"], params["stem_s"], params["stem_b"],
                None, stride=2, relu=True)
    x = maxpool_3x3_s2(x)
    for blocks in params["layers"]:
        for blk in blocks:
            x = bottleneck(x, blk)
    return global_avg_pool(x)  # [B, 2048] f32


# ----------------------------------------------------------------------------
# main
# ----------------------------------------------------------------------------

if __name__ == "__main__":
    key = jax.random.PRNGKey(0)
    # small image consistent with the module's forward: NCHW, 3 input channels
    x = jax.random.normal(key, (2, 3, 16, 16), dtype=jnp.float32)

    params = build_resnet152_params(seed=0)

    feats = image_encoder_resnet152_forward(params, x)
    feats = jax.block_until_ready(feats)

    assert feats.shape == (2, 2048), feats.shape
    assert bool(jnp.all(jnp.isfinite(feats)))
    print("KERNEL_OK")
</pallas_src>

<mosaic_0001>
module attributes {stable_mosaic.version = 11 : i64} {
  func.func @kernel(%arg0: i32, %arg1: i32, %arg2: i32, %arg3: memref<128x256xbf16, #tpu.memory_space<vmem>>, %arg4: memref<256x128xbf16, #tpu.memory_space<vmem>>, %arg5: memref<1x128xf32, #tpu.memory_space<vmem>>, %arg6: memref<1x128xf32, #tpu.memory_space<vmem>>, %arg7: memref<128x128xbf16, #tpu.memory_space<vmem>>, %arg8: memref<128x128xf32, #tpu.memory_space<vmem>>) attributes {dimension_semantics = [#tpu.dimension_semantics<parallel>, #tpu.dimension_semantics<parallel>, #tpu.dimension_semantics<arbitrary>], iteration_bounds = array<i64: 1, 1, 1>, scalar_prefetch = 0 : i64, scratch_operands = 1 : i64, tpu.core_type = #tpu.core_type<tc>, window_params = [{transform_indices = @transform_0, window_bounds = array<i64: 128, 256>}, {transform_indices = @transform_1, window_bounds = array<i64: 256, 128>}, {transform_indices = @transform_2, window_bounds = array<i64: 1, 128>}, {transform_indices = @transform_3, window_bounds = array<i64: 1, 128>}, {transform_indices = @transform_4, window_bounds = array<i64: 128, 128>}]} {
    %c0_i32 = arith.constant 0 : i32
    %0 = arith.cmpi eq, %arg2, %c0_i32 : i32
    %1 = arith.extui %0 : i1 to i32
    %c0_i32_0 = arith.constant 0 : i32
    %2 = arith.cmpi ne, %1, %c0_i32_0 : i32
    scf.if %2 {
      %cst_10 = arith.constant 0.000000e+00 : f32
      %12 = vector.broadcast %cst_10 : f32 to vector<128x128xf32>
      %c0_11 = arith.constant 0 : index
      %c0_12 = arith.constant 0 : index
      %13 = vector.load %arg8[%c0_11, %c0_12] : memref<128x128xf32, #tpu.memory_space<vmem>>, vector<128x128xf32>
      tpu.vector_store %arg8[%c0_11, %c0_12], %12 {strides = array<i32>} : memref<128x128xf32, #tpu.memory_space<vmem>>, vector<128x128xf32>,
    } else {
    }
    %c0 = arith.constant 0 : index
    %c0_1 = arith.constant 0 : index
    %3 = vector.load %arg8[%c0, %c0_1] : memref<128x128xf32, #tpu.memory_space<vmem>>, vector<128x128xf32>
    %c0_2 = arith.constant 0 : index
    %c0_3 = arith.constant 0 : index
    %4 = vector.load %arg3[%c0_2, %c0_3] : memref<128x256xbf16, #tpu.memory_space<vmem>>, vector<128x256xbf16>
    %c0_4 = arith.constant 0 : index
    %c0_5 = arith.constant 0 : index
    %5 = vector.load %arg4[%c0_4, %c0_5] : memref<256x128xbf16, #tpu.memory_space<vmem>>, vector<256x128xbf16>
    %cst = arith.constant dense<0.000000e+00> : vector<128x128xf32>
    %6 = tpu.matmul %4, %5, %cst {dimension_numbers = #tpu.dot_dimension_numbers<[1], [0], [0], [1], [0, 0, 1, 1], [], []>} : vector<128x256xbf16>, vector<256x128xbf16>, vector<128x128xf32> -> vector<128x128xf32>
    %7 = arith.addf %3, %6 : vector<128x128xf32>
    %c0_6 = arith.constant 0 : index
    %c0_7 = arith.constant 0 : index
    %8 = vector.load %arg8[%c0_6, %c0_7] : memref<128x128xf32, #tpu.memory_space<vmem>>, vector<128x128xf32>
    tpu.vector_store %arg8[%c0_6, %c0_7], %7 {strides = array<i32>} : memref<128x128xf32, #tpu.memory_space<vmem>>, vector<128x128xf32>,
    %c0_i32_8 = arith.constant 0 : i32
    %9 = arith.cmpi eq, %arg2, %c0_i32_8 : i32
    %10 = arith.extui %9 : i1 to i32
    %c0_i32_9 = arith.constant 0 : i32
    %11 = arith.cmpi ne, %10, %c0_i32_9 : i32
    scf.if %11 {
      %c0_10 = arith.constant 0 : index
      %c0_11 = arith.constant 0 : index
      %12 = vector.load %arg8[%c0_10, %c0_11] : memref<128x128xf32, #tpu.memory_space<vmem>>, vector<128x128xf32>
      %c0_12 = arith.constant 0 : index
      %c0_13 = arith.constant 0 : index
      %13 = vector.load %arg5[%c0_12, %c0_13] : memref<1x128xf32, #tpu.memory_space<vmem>>, vector<1x128xf32>
      %14 = vector.broadcast %13 : vector<1x128xf32> to vector<128x128xf32>
      %15 = arith.mulf %12, %14 : vector<128x128xf32>
      %c0_14 = arith.constant 0 : index
      %c0_15 = arith.constant 0 : index
      %16 = vector.load %arg6[%c0_14, %c0_15] : memref<1x128xf32, #tpu.memory_space<vmem>>, vector<1x128xf32>
      %17 = vector.broadcast %16 : vector<1x128xf32> to vector<128x128xf32>
      %18 = arith.addf %15, %17 : vector<128x128xf32>
      %cst_16 = arith.constant 0.000000e+00 : f32
      %19 = vector.broadcast %cst_16 : f32 to vector<128x128xf32>
      %20 = arith.maximumf %18, %19 : vector<128x128xf32>
      %21 = arith.truncf %20 : vector<128x128xf32> to vector<128x128xbf16>
      %c0_17 = arith.constant 0 : index
      %c0_18 = arith.constant 0 : index
      %22 = vector.load %arg7[%c0_17, %c0_18] : memref<128x128xbf16, #tpu.memory_space<vmem>>, vector<128x128xbf16>
      tpu.vector_store %arg7[%c0_17, %c0_18], %21 {strides = array<i32>} : memref<128x128xbf16, #tpu.memory_space<vmem>>, vector<128x128xbf16>,
    } else {
    }
    return
  }
  func.func @transform_0(%arg0: i32, %arg1: i32, %arg2: i32) -> (i32, i32) {
    %c0_i32 = arith.constant 0 : i32
    return %arg0, %arg2 : i32, i32
  }
  func.func @transform_1(%arg0: i32, %arg1: i32, %arg2: i32) -> (i32, i32) {
    %c0_i32 = arith.constant 0 : i32
    return %arg2, %arg1 : i32, i32
  }
  func.func @transform_2(%arg0: i32, %arg1: i32, %arg2: i32) -> (i32, i32) {
    %c0_i32 = arith.constant 0 : i32
    %c0_i32_0 = arith.constant 0 : i32
    return %c0_i32, %arg1 : i32, i32
  }
  func.func @transform_3(%arg0: i32, %arg1: i32, %arg2: i32) -> (i32, i32) {
    %c0_i32 = arith.constant 0 : i32
    %c0_i32_0 = arith.constant 0 : i32
    return %c0_i32, %arg1 : i32, i32
  }
  func.func @transform_4(%arg0: i32, %arg1: i32, %arg2: i32) -> (i32, i32) {
    %c0_i32 = arith.constant 0 : i32
    return %arg0, %arg1 : i32, i32
  }
}

</mosaic_0001>

<llo_original>
// kernel: conv_bn.1
$region0: #{conv_bn.1}
  #allocation0 [shape = 'u32[]', space=smem, size = 0x4, offset = 0x4, fixed_abs, tag = 'smem constant byte address 0x4 - core index']
  #allocation1 [shape = 'u32[144,128]{1,0:T(1,128)}', space=vmem, size = 0x12000, scoped, tag = 'internal scratch']
  #allocation2 [shape = 'f32[128,128]{1,0:T(8,128)}', space=vmem, size = 0x10000, scoped, tag = 'scratch operand']
  %s0 = inlined_call_operand.vmem [shape: bf16[128,256], index: 0, kind: input, shape index: {}]
  %s1 = inlined_call_operand.vmem [shape: bf16[256,128], index: 1, kind: input, shape index: {}]
  %s2 = inlined_call_operand.vmem [shape: f32[1,128], index: 2, kind: input, shape index: {}]
  %s3 = inlined_call_operand.vmem [shape: f32[1,128], index: 3, kind: input, shape index: {}]
  %s4 = inlined_call_operand.hbm [shape: bf16[128,128], index: 4, kind: output, shape index: {}]
  %s5 = sld [smem:[#allocation0]]
  $region34: #{conv_bn.1} parent=0
    _
  %s7 = ssub.s32 1, %s5
  %s8 = scalar_select 0, %s7, %s5
  $region1: #{conv_bn.1} parent=0
    #allocation3 [shape = 'u8[32768]{0}', space=vmem, size = 0x8000, scoped, tag = 'output window, operand 0, single buffered']
    #allocation4 [shape = 's32[1]{0}', space=sflag, size = 0x4, scoped, tag = 'scoped memory for conv_bn.1']
    %9 = vsyncpa [#allocation4], 0
    // Predicated region
    $region2: #{conv_bn.1} parent=1 // pred_check
      _
    $region3: #{conv_bn.1} parent=1 // pred_check_branch
      %11 = sbr.rel (0) target = $region5
    $region4: #{conv_bn.1} parent=1 // pred_region
      _
    $region5: #{conv_bn.1} parent=1 // pred_fallthru
      _
    // Predicated region
    $region6: #{conv_bn.1} parent=1 // pred_check
      _
    $region7: #{conv_bn.1} parent=1 // pred_check_branch
      %13 = sbr.rel (0) target = $region9
    $region8: #{conv_bn.1} parent=1 // pred_region
      _
    $region9: #{conv_bn.1} parent=1 // pred_fallthru
      _
    // Predicated region
    $region10: #{conv_bn.1} parent=1 // pred_check
      _
    $region11: #{conv_bn.1} parent=1 // pred_check_branch
      %15 = sbr.rel (0) target = $region13
    $region12: #{conv_bn.1} parent=1 // pred_region
      _
    $region13: #{conv_bn.1} parent=1 // pred_fallthru
      _
    // Predicated region
    $region14: #{conv_bn.1} parent=1 // pred_check
      _
    $region15: #{conv_bn.1} parent=1 // pred_check_branch
      %17 = sbr.rel (0) target = $region17
    $region16: #{conv_bn.1} parent=1 // pred_region
      _
    $region17: #{conv_bn.1} parent=1 // pred_fallthru
      _
    %p19 = scmp.eq.s32.totalorder 0, 0
    // Predicated region
    $region18: #{conv_bn.1} parent=1 // pred_check
      %p20 = pneg %p19
    $region19: #{conv_bn.1} parent=1 // pred_check_branch
      %22 = sbr.rel (%p20) target = $region21
    $region20: #{conv_bn.1} parent=1 // pred_region
      %23 = vst [vmem:[#allocation2] sm:$0xff] 0.0
      %24 = vst [vmem:[#allocation2 + $0x8] sm:$0xff] 0.0
      %25 = vst [vmem:[#allocation2 + $0x10] sm:$0xff] 0.0
      %26 = vst [vmem:[#allocation2 + $0x18] sm:$0xff] 0.0
      %27 = vst [vmem:[#allocation2 + $0x20] sm:$0xff] 0.0
      %28 = vst [vmem:[#allocation2 + $0x28] sm:$0xff] 0.0
      %29 = vst [vmem:[#allocation2 + $0x30] sm:$0xff] 0.0
      %30 = vst [vmem:[#allocation2 + $0x38] sm:$0xff] 0.0
      %31 = vst [vmem:[#allocation2 + $0x40] sm:$0xff] 0.0
      %32 = vst [vmem:[#allocation2 + $0x48] sm:$0xff] 0.0
      %33 = vst [vmem:[#allocation2 + $0x50] sm:$0xff] 0.0
      %34 = vst [vmem:[#allocation2 + $0x58] sm:$0xff] 0.0
      %35 = vst [vmem:[#allocation2 + $0x60] sm:$0xff] 0.0
      %36 = vst [vmem:[#allocation2 + $0x68] sm:$0xff] 0.0
      %37 = vst [vmem:[#allocation2 + $0x70] sm:$0xff] 0.0
      %38 = vst [vmem:[#allocation2 + $0x78] sm:$0xff] 0.0
    $region21: #{conv_bn.1} parent=1 // pred_fallthru
      _
    %v39 = vld [vmem:[#allocation2] sm:$0xff]
    %v40 = vld [vmem:[#allocation2 + $0x8] sm:$0xff]
    %v41 = vld [vmem:[#allocation2 + $0x10] sm:$0xff]
    %v42 = vld [vmem:[#allocation2 + $0x18] sm:$0xff]
    %v43 = vld [vmem:[#allocation2 + $0x20] sm:$0xff]
    %v44 = vld [vmem:[#allocation2 + $0x28] sm:$0xff]
    %v45 = vld [vmem:[#allocation2 + $0x30] sm:$0xff]
    %v46 = vld [vmem:[#allocation2 + $0x38] sm:$0xff]
    %v47 = vld [vmem:[#allocation2 + $0x40] sm:$0xff]
    %v48 = vld [vmem:[#allocation2 + $0x48] sm:$0xff]
    %v49 = vld [vmem:[#allocation2 + $0x50] sm:$0xff]
    %v50 = vld [vmem:[#allocation2 + $0x58] sm:$0xff]
    %v51 = vld [vmem:[#allocation2 + $0x60] sm:$0xff]
    %v52 = vld [vmem:[#allocation2 + $0x68] sm:$0xff]
    %v53 = vld [vmem:[#allocation2 + $0x70] sm:$0xff]
    %v54 = vld [vmem:[#allocation2 + $0x78] sm:$0xff]
    %v55 = vld [vmem:[%s0] sm:$0xff]
    %v56 = vld [vmem:[%s0 + $0x8] sm:$0xff]
    %v57 = vld [vmem:[%s0 + $0x10] sm:$0xff]
    %v58 = vld [vmem:[%s0 + $0x18] sm:$0xff]
    %v59 = vld [vmem:[%s0 + $0x20] sm:$0xff]
    %v60 = vld [vmem:[%s0 + $0x28] sm:$0xff]
    %v61 = vld [vmem:[%s0 + $0x30] sm:$0xff]
    %v62 = vld [vmem:[%s0 + $0x38] sm:$0xff]
    %v63 = vld [vmem:[%s0 + $0x40] sm:$0xff]
    %v64 = vld [vmem:[%s0 + $0x48] sm:$0xff]
    %v65 = vld [vmem:[%s0 + $0x50] sm:$0xff]
    %v66 = vld [vmem:[%s0 + $0x58] sm:$0xff]
    %v67 = vld [vmem:[%s0 + $0x60] sm:$0xff]
    %v68 = vld [vmem:[%s0 + $0x68] sm:$0xff]
    %v69 = vld [vmem:[%s0 + $0x70] sm:$0xff]
    %v70 = vld [vmem:[%s0 + $0x78] sm:$0xff]
    %v71 = vld [vmem:[%s1] sm:$0xf]
    %v72 = vld [vmem:[%s1 + $0x4] sm:$0xf]
    %v73 = vld [vmem:[%s1 + $0x8] sm:$0xf]
    %v74 = vld [vmem:[%s1 + $0xc] sm:$0xf]
    %v75 = vld [vmem:[%s1 + $0x10] sm:$0xf]
    %v76 = vld [vmem:[%s1 + $0x14] sm:$0xf]
    %v77 = vld [vmem:[%s1 + $0x18] sm:$0xf]
    %v78 = vld [vmem:[%s1 + $0x1c] sm:$0xf]
    %v79 = vld [vmem:[%s1 + $0x20] sm:$0xf]
    %v80 = vld [vmem:[%s1 + $0x24] sm:$0xf]
    %v81 = vld [vmem:[%s1 + $0x28] sm:$0xf]
    %v82 = vld [vmem:[%s1 + $0x2c] sm:$0xf]
    %v83 = vld [vmem:[%s1 + $0x30] sm:$0xf]
    %v84 = vld [vmem:[%s1 + $0x34] sm:$0xf]
    %v85 = vld [vmem:[%s1 + $0x38] sm:$0xf]
    %v86 = vld [vmem:[%s1 + $0x3c] sm:$0xf]
    %v87 = vld [vmem:[%s1 + $0x40] sm:$0xf]
    %v88 = vld [vmem:[%s1 + $0x44] sm:$0xf]
    %v89 = vld [vmem:[%s1 + $0x48] sm:$0xf]
    %v90 = vld [vmem:[%s1 + $0x4c] sm:$0xf]
    %v91 = vld [vmem:[%s1 + $0x50] sm:$0xf]
    %v92 = vld [vmem:[%s1 + $0x54] sm:$0xf]
    %v93 = vld [vmem:[%s1 + $0x58] sm:$0xf]
    %v94 = vld [vmem:[%s1 + $0x5c] sm:$0xf]
    %v95 = vld [vmem:[%s1 + $0x60] sm:$0xf]
    %v96 = vld [vmem:[%s1 + $0x64] sm:$0xf]
    %v97 = vld [vmem:[%s1 + $0x68] sm:$0xf]
    %v98 = vld [vmem:[%s1 + $0x6c] sm:$0xf]
    %v99 = vld [vmem:[%s1 + $0x70] sm:$0xf]
    %v100 = vld [vmem:[%s1 + $0x74] sm:$0xf]
    %v101 = vld [vmem:[%s1 + $0x78] sm:$0xf]
    %v102 = vld [vmem:[%s1 + $0x7c] sm:$0xf]
    %v119 = vunpack.c.l.b16 %v55
    %v120 = vunpack.c.h.b16 %v55
    %v121 = vunpack.c.l.b16 %v56
    %v122 = vunpack.c.h.b16 %v56
    %v123 = vunpack.c.l.b16 %v57
    %v124 = vunpack.c.h.b16 %v57
    %v125 = vunpack.c.l.b16 %v58
    %v126 = vunpack.c.h.b16 %v58
    %v127 = vunpack.c.l.b16 %v59
    %v128 = vunpack.c.h.b16 %v59
    %v129 = vunpack.c.l.b16 %v60
    %v130 = vunpack.c.h.b16 %v60
    %v131 = vunpack.c.l.b16 %v61
    %v132 = vunpack.c.h.b16 %v61
    %v133 = vunpack.c.l.b16 %v62
    %v134 = vunpack.c.h.b16 %v62
    %v135 = vunpack.c.l.b16 %v63
    %v136 = vunpack.c.h.b16 %v63
    %v137 = vunpack.c.l.b16 %v64
    %v138 = vunpack.c.h.b16 %v64
    %v139 = vunpack.c.l.b16 %v65
    %v140 = vunpack.c.h.b16 %v65
    %v141 = vunpack.c.l.b16 %v66
    %v142 = vunpack.c.h.b16 %v66
    %v143 = vunpack.c.l.b16 %v67
    %v144 = vunpack.c.h.b16 %v67
    %v145 = vunpack.c.l.b16 %v68
    %v146 = vunpack.c.h.b16 %v68
    %v147 = vunpack.c.l.b16 %v69
    %v148 = vunpack.c.h.b16 %v69
    %v149 = vunpack.c.l.b16 %v70
    %v150 = vunpack.c.h.b16 %v70
    %v151 = vpack.c.b16 %v121, %v119
    %v152 = vpack.c.b16 %v122, %v120
    %v153 = vpack.c.b16 %v125, %v123
    %v154 = vpack.c.b16 %v126, %v124
    %v155 = vpack.c.b16 %v129, %v127
    %v156 = vpack.c.b16 %v130, %v128
    %v157 = vpack.c.b16 %v133, %v131
    %v158 = vpack.c.b16 %v134, %v132
    %v159 = vpack.c.b16 %v137, %v135
    %v160 = vpack.c.b16 %v138, %v136
    %v161 = vpack.c.b16 %v141, %v139
    %v162 = vpack.c.b16 %v142, %v140
    %v163 = vpack.c.b16 %v145, %v143
    %v164 = vpack.c.b16 %v146, %v144
    %v165 = vpack.c.b16 %v149, %v147
    %v166 = vpack.c.b16 %v150, %v148
    %v215 = vunpack.c.l.b16 %v71
    %v216 = vunpack.c.l.b16 %v72
    %v217 = vunpack.c.l.b16 %v73
    %v218 = vunpack.c.l.b16 %v74
    %v219 = vunpack.c.l.b16 %v75
    %v220 = vunpack.c.l.b16 %v76
    %v221 = vunpack.c.l.b16 %v77
    %v222 = vunpack.c.l.b16 %v78
    %v223 = vunpack.c.l.b16 %v79
    %v224 = vunpack.c.l.b16 %v80
    %v225 = vunpack.c.l.b16 %v81
    %v226 = vunpack.c.l.b16 %v82
    %v227 = vunpack.c.l.b16 %v83
    %v228 = vunpack.c.l.b16 %v84
    %v229 = vunpack.c.l.b16 %v85
    %v230 = vunpack.c.l.b16 %v86
    %v231 = vunpack.c.l.b16 %v87
    %v232 = vunpack.c.l.b16 %v88
    %v233 = vunpack.c.l.b16 %v89
    %v234 = vunpack.c.l.b16 %v90
    %v235 = vunpack.c.l.b16 %v91
    %v236 = vunpack.c.l.b16 %v92
    %v237 = vunpack.c.l.b16 %v93
    %v238 = vunpack.c.l.b16 %v94
    %v239 = vunpack.c.l.b16 %v95
    %v240 = vunpack.c.l.b16 %v96
    %v241 = vunpack.c.l.b16 %v97
    %v242 = vunpack.c.l.b16 %v98
    %v243 = vunpack.c.l.b16 %v99
    %v244 = vunpack.c.l.b16 %v100
    %v245 = vunpack.c.l.b16 %v101
    %v246 = vunpack.c.l.b16 %v102
    %v247 = vpack.c.b16 %v216, %v215
    %v248 = vpack.c.b16 %v218, %v217
    %v249 = vpack.c.b16 %v220, %v219
    %v250 = vpack.c.b16 %v222, %v221
    %v251 = vpack.c.b16 %v224, %v223
    %v252 = vpack.c.b16 %v226, %v225
    %v253 = vpack.c.b16 %v228, %v227
    %v254 = vpack.c.b16 %v230, %v229
    %v255 = vpack.c.b16 %v232, %v231
    %v256 = vpack.c.b16 %v234, %v233
    %v257 = vpack.c.b16 %v236, %v235
    %v258 = vpack.c.b16 %v238, %v237
    %v259 = vpack.c.b16 %v240, %v239
    %v260 = vpack.c.b16 %v242, %v241
    %v261 = vpack.c.b16 %v244, %v243
    %v262 = vpack.c.b16 %v246, %v245
    %279 = vmatprep.subr.bf16.mxu0 0
    %280 = vmatpush1.bf16.msra.mxu0 %v254
    %281 = vmatprep.subr.bf16.mxu0 0
    %282 = vmatpush1.bf16.msra.mxu0 %v253
    %283 = vmatprep.subr.bf16.mxu0 0
    %284 = vmatpush1.bf16.msra.mxu0 %v252
    %285 = vmatprep.subr.bf16.mxu0 0
    %286 = vmatpush1.bf16.msra.mxu0 %v251
    %287 = vmatprep.subr.bf16.mxu0 0
    %288 = vmatpush1.bf16.msra.mxu0 %v250
    %289 = vmatprep.subr.bf16.mxu0 0
    %290 = vmatpush1.bf16.msra.mxu0 %v249
    %291 = vmatprep.subr.bf16.mxu0 0
    %292 = vmatpush1.bf16.msra.mxu0 %v248
    %293 = vmatprep.subr.bf16.mxu0 0
    %294 = vmatpush1.bf16.msra.mxu0 %v247
    %295 = vmatprep.subr.bf16.mxu0 0
    %296 = vmatpush2.bf16.msra.mxu0 %v262
    %297 = vmatprep.subr.bf16.mxu0 0
    %298 = vmatpush2.bf16.msra.mxu0 %v261
    %299 = vmatprep.subr.bf16.mxu0 0
    %300 = vmatpush2.bf16.msra.mxu0 %v260
    %301 = vmatprep.subr.bf16.mxu0 0
    %302 = vmatpush2.bf16.msra.mxu0 %v259
    %303 = vmatprep.subr.bf16.mxu0 0
    %304 = vmatpush2.bf16.msra.mxu0 %v258
    %305 = vmatprep.subr.bf16.mxu0 0
    %306 = vmatpush2.bf16.msra.mxu0 %v257
    %307 = vmatprep.subr.bf16.mxu0 0
    %308 = vmatpush2.bf16.msra.mxu0 %v256
    %309 = vmatprep.subr.bf16.mxu0 0
    %310 = vmatpush2.bf16.msra.mxu0 %v255
    %311 = vmatprep.mubr.bf16.mxu0 %v152
    %312 = vmatmul.mubr.bf16.gmra.mxu0 %v151
    %v313 = vpop.f32.mrf.mxu0
    %v314 = vadd.f32 0.0, %v313
    %v315 = vpop.f32.mrf.mxu0
    %v316 = vpop.f32.mrf.mxu0
    %v317 = vadd.f32 0.0, %v316
    %v318 = vpop.f32.mrf.mxu0
    %319 = vmatprep.mubr.bf16.mxu0 %v154
    %320 = vmatmul.mubr.bf16.gmra.mxu0 %v153
    %v321 = vpop.f32.mrf.mxu0
    %v322 = vadd.f32 0.0, %v321
    %v323 = vpop.f32.mrf.mxu0
    %v324 = vpop.f32.mrf.mxu0
    %v325 = vadd.f32 0.0, %v324
    %v326 = vpop.f32.mrf.mxu0
    %327 = vmatprep.mubr.bf16.mxu0 %v156
    %328 = vmatmul.mubr.bf16.gmra.mxu0 %v155
    %v329 = vpop.f32.mrf.mxu0
    %v330 = vadd.f32 0.0, %v329
    %v331 = vpop.f32.mrf.mxu0
    %v332 = vpop.f32.mrf.mxu0
    %v333 = vadd.f32 0.0, %v332
    %v334 = vpop.f32.mrf.mxu0
    %335 = vmatprep.mubr.bf16.mxu0 %v158
    %336 = vmatmul.mubr.bf16.gmra.mxu0 %v157
    %v337 = vpop.f32.mrf.mxu0
    %v338 = vadd.f32 0.0, %v337
    %v339 = vpop.f32.mrf.mxu0
    %v340 = vpop.f32.mrf.mxu0
    %v341 = vadd.f32 0.0, %v340
    %v342 = vpop.f32.mrf.mxu0
    %343 = vmatprep.mubr.bf16.mxu0 %v160
    %344 = vmatmul.mubr.bf16.gmra.mxu0 %v159
    %v345 = vpop.f32.mrf.mxu0
    %v346 = vadd.f32 0.0, %v345
    %v347 = vpop.f32.mrf.mxu0
    %v348 = vpop.f32.mrf.mxu0
    %v349 = vadd.f32 0.0, %v348
    %v350 = vpop.f32.mrf.mxu0
    %351 = vmatprep.mubr.bf16.mxu0 %v162
    %352 = vmatmul.mubr.bf16.gmra.mxu0 %v161
    %v353 = vpop.f32.mrf.mxu0
    %v354 = vadd.f32 0.0, %v353
    %v355 = vpop.f32.mrf.mxu0
    %v356 = vpop.f32.mrf.mxu0
    %v357 = vadd.f32 0.0, %v356
    %v358 = vpop.f32.mrf.mxu0
    %359 = vmatprep.mubr.bf16.mxu0 %v164
    %360 = vmatmul.mubr.bf16.gmra.mxu0 %v163
    %v361 = vpop.f32.mrf.mxu0
    %v362 = vadd.f32 0.0, %v361
    %v363 = vpop.f32.mrf.mxu0
    %v364 = vpop.f32.mrf.mxu0
    %v365 = vadd.f32 0.0, %v364
    %v366 = vpop.f32.mrf.mxu0
    %367 = vmatprep.mubr.bf16.mxu0 %v166
    %368 = vmatmul.mubr.bf16.gmra.mxu0 %v165
    %v369 = vpop.f32.mrf.mxu0
    %v370 = vadd.f32 0.0, %v369
    %v371 = vpop.f32.mrf.mxu0
    %v372 = vpop.f32.mrf.mxu0
    %v373 = vadd.f32 0.0, %v372
    %v374 = vpop.f32.mrf.mxu0
    %375 = vdwg.mxu0
    %v376 = vadd.f32 %v39, %v314
    %v377 = vadd.f32 %v40, %v317
    %v378 = vadd.f32 %v41, %v322
    %v379 = vadd.f32 %v42, %v325
    %v380 = vadd.f32 %v43, %v330
    %v381 = vadd.f32 %v44, %v333
    %v382 = vadd.f32 %v45, %v338
    %v383 = vadd.f32 %v46, %v341
    %v384 = vadd.f32 %v47, %v346
    %v385 = vadd.f32 %v48, %v349
    %v386 = vadd.f32 %v49, %v354
    %v387 = vadd.f32 %v50, %v357
    %v388 = vadd.f32 %v51, %v362
    %v389 = vadd.f32 %v52, %v365
    %v390 = vadd.f32 %v53, %v370
    %v391 = vadd.f32 %v54, %v373
    %392 = vst [vmem:[#allocation2] sm:$0xff] %v376
    %393 = vst [vmem:[#allocation2 + $0x8] sm:$0xff] %v377
    %394 = vst [vmem:[#allocation2 + $0x10] sm:$0xff] %v378
    %395 = vst [vmem:[#allocation2 + $0x18] sm:$0xff] %v379
    %396 = vst [vmem:[#allocation2 + $0x20] sm:$0xff] %v380
    %397 = vst [vmem:[#allocation2 + $0x28] sm:$0xff] %v381
    %398 = vst [vmem:[#allocation2 + $0x30] sm:$0xff] %v382
    %399 = vst [vmem:[#allocation2 + $0x38] sm:$0xff] %v383
    %400 = vst [vmem:[#allocation2 + $0x40] sm:$0xff] %v384
    %401 = vst [vmem:[#allocation2 + $0x48] sm:$0xff] %v385
    %402 = vst [vmem:[#allocation2 + $0x50] sm:$0xff] %v386
    %403 = vst [vmem:[#allocation2 + $0x58] sm:$0xff] %v387
    %404 = vst [vmem:[#allocation2 + $0x60] sm:$0xff] %v388
    %405 = vst [vmem:[#allocation2 + $0x68] sm:$0xff] %v389
    %406 = vst [vmem:[#allocation2 + $0x70] sm:$0xff] %v390
    %407 = vst [vmem:[#allocation2 + $0x78] sm:$0xff] %v391
    // Predicated region
    $region22: #{conv_bn.1} parent=1 // pred_check
      %p408 = pneg %p19
    $region23: #{conv_bn.1} parent=1 // pred_check_branch
      %410 = sbr.rel (%p408) target = $region25
    $region24: #{conv_bn.1} parent=1 // pred_region
      %v411 = vld [vmem:[#allocation2] sm:$0xff]
      %v412 = vld [vmem:[#allocation2 + $0x8] sm:$0xff]
      %v413 = vld [vmem:[#allocation2 + $0x10] sm:$0xff]
      %v414 = vld [vmem:[#allocation2 + $0x18] sm:$0xff]
      %v415 = vld [vmem:[#allocation2 + $0x20] sm:$0xff]
      %v416 = vld [vmem:[#allocation2 + $0x28] sm:$0xff]
      %v417 = vld [vmem:[#allocation2 + $0x30] sm:$0xff]
      %v418 = vld [vmem:[#allocation2 + $0x38] sm:$0xff]
      %v419 = vld [vmem:[#allocation2 + $0x40] sm:$0xff]
      %v420 = vld [vmem:[#allocation2 + $0x48] sm:$0xff]
      %v421 = vld [vmem:[#allocation2 + $0x50] sm:$0xff]
      %v422 = vld [vmem:[#allocation2 + $0x58] sm:$0xff]
      %v423 = vld [vmem:[#allocation2 + $0x60] sm:$0xff]
      %v424 = vld [vmem:[#allocation2 + $0x68] sm:$0xff]
      %v425 = vld [vmem:[#allocation2 + $0x70] sm:$0xff]
      %v426 = vld [vmem:[#allocation2 + $0x78] sm:$0xff]
      %v427 = vld [vmem:[%s2] sm:$0x1]
      %v429 = vlaneseq
      %v430 = vshrl.u32 %v429, 7
      %v431 = vsub.s32 0, %v430
      %v432 = vrot.slane %v427, %v431
      %v434 = vmul.f32 %v411, %v432
      %v435 = vmul.f32 %v412, %v432
      %v436 = vmul.f32 %v413, %v432
      %v437 = vmul.f32 %v414, %v432
      %v438 = vmul.f32 %v415, %v432
      %v439 = vmul.f32 %v416, %v432
      %v440 = vmul.f32 %v417, %v432
      %v441 = vmul.f32 %v418, %v432
      %v442 = vmul.f32 %v419, %v432
      %v443 = vmul.f32 %v420, %v432
      %v444 = vmul.f32 %v421, %v432
      %v445 = vmul.f32 %v422, %v432
      %v446 = vmul.f32 %v423, %v432
      %v447 = vmul.f32 %v424, %v432
      %v448 = vmul.f32 %v425, %v432
      %v449 = vmul.f32 %v426, %v432
      %v450 = vld [vmem:[%s3] sm:$0x1]
      %v452 = vlaneseq
      %v453 = vshrl.u32 %v452, 7
      %v454 = vsub.s32 0, %v453
      %v455 = vrot.slane %v450, %v454
      %v457 = vadd.f32 %v434, %v455
      %v458 = vadd.f32 %v435, %v455
      %v459 = vadd.f32 %v436, %v455
      %v460 = vadd.f32 %v437, %v455
      %v461 = vadd.f32 %v438, %v455
      %v462 = vadd.f32 %v439, %v455
      %v463 = vadd.f32 %v440, %v455
      %v464 = vadd.f32 %v441, %v455
      %v465 = vadd.f32 %v442, %v455
      %v466 = vadd.f32 %v443, %v455
      %v467 = vadd.f32 %v444, %v455
      %v468 = vadd.f32 %v445, %v455
      %v469 = vadd.f32 %v446, %v455
      %v470 = vadd.f32 %v447, %v455
      %v471 = vadd.f32 %v448, %v455
      %v472 = vadd.f32 %v449, %v455
      %v473 = vmax.f32 %v457, 0.0
      %v474 = vmax.f32 %v458, 0.0
      %v475 = vmax.f32 %v459, 0.0
      %v476 = vmax.f32 %v460, 0.0
      %v477 = vmax.f32 %v461, 0.0
      %v478 = vmax.f32 %v462, 0.0
      %v479 = vmax.f32 %v463, 0.0
      %v480 = vmax.f32 %v464, 0.0
      %v481 = vmax.f32 %v465, 0.0
      %v482 = vmax.f32 %v466, 0.0
      %v483 = vmax.f32 %v467, 0.0
      %v484 = vmax.f32 %v468, 0.0
      %v485 = vmax.f32 %v469, 0.0
      %v486 = vmax.f32 %v470, 0.0
      %v487 = vmax.f32 %v471, 0.0
      %v488 = vmax.f32 %v472, 0.0
      %v489 = vpack.c.bf16 %v474, %v473
      %v490 = vpack.c.bf16 %v476, %v475
      %v491 = vpack.c.bf16 %v478, %v477
      %v492 = vpack.c.bf16 %v480, %v479
      %v493 = vpack.c.bf16 %v482, %v481
      %v494 = vpack.c.bf16 %v484, %v483
      %v495 = vpack.c.bf16 %v486, %v485
      %v496 = vpack.c.bf16 %v488, %v487
      %v505 = vunpack.c.l.b16 %v489
      %v506 = vunpack.c.h.b16 %v489
      %v507 = vunpack.c.l.b16 %v490
      %v508 = vunpack.c.h.b16 %v490
      %v509 = vunpack.c.l.b16 %v491
      %v510 = vunpack.c.h.b16 %v491
      %v511 = vunpack.c.l.b16 %v492
      %v512 = vunpack.c.h.b16 %v492
      %v513 = vunpack.c.l.b16 %v493
      %v514 = vunpack.c.h.b16 %v493
      %v515 = vunpack.c.l.b16 %v494
      %v516 = vunpack.c.h.b16 %v494
      %v517 = vunpack.c.l.b16 %v495
      %v518 = vunpack.c.h.b16 %v495
      %v519 = vunpack.c.l.b16 %v496
      %v520 = vunpack.c.h.b16 %v496
      %v521 = vpack.c.b16 %v505, %v505
      %v522 = vpack.c.b16 %v506, %v506
      %v523 = vpack.c.b16 %v507, %v507
      %v524 = vpack.c.b16 %v508, %v508
      %v525 = vpack.c.b16 %v509, %v509
      %v526 = vpack.c.b16 %v510, %v510
      %v527 = vpack.c.b16 %v511, %v511
      %v528 = vpack.c.b16 %v512, %v512
      %v529 = vpack.c.b16 %v513, %v513
      %v530 = vpack.c.b16 %v514, %v514
      %v531 = vpack.c.b16 %v515, %v515
      %v532 = vpack.c.b16 %v516, %v516
      %v533 = vpack.c.b16 %v517, %v517
      %v534 = vpack.c.b16 %v518, %v518
      %v535 = vpack.c.b16 %v519, %v519
      %v536 = vpack.c.b16 %v520, %v520
      %553 = vst [vmem:[#allocation3] sm:$0xf] %v521
      %554 = vst [vmem:[#allocation3 + $0x4] sm:$0xf] %v522
      %555 = vst [vmem:[#allocation3 + $0x8] sm:$0xf] %v523
      %556 = vst [vmem:[#allocation3 + $0xc] sm:$0xf] %v524
      %557 = vst [vmem:[#allocation3 + $0x10] sm:$0xf] %v525
      %558 = vst [vmem:[#allocation3 + $0x14] sm:$0xf] %v526
      %559 = vst [vmem:[#allocation3 + $0x18] sm:$0xf] %v527
      %560 = vst [vmem:[#allocation3 + $0x1c] sm:$0xf] %v528
      %561 = vst [vmem:[#allocation3 + $0x20] sm:$0xf] %v529
      %562 = vst [vmem:[#allocation3 + $0x24] sm:$0xf] %v530
      %563 = vst [vmem:[#allocation3 + $0x28] sm:$0xf] %v531
      %564 = vst [vmem:[#allocation3 + $0x2c] sm:$0xf] %v532
      %565 = vst [vmem:[#allocation3 + $0x30] sm:$0xf] %v533
      %566 = vst [vmem:[#allocation3 + $0x34] sm:$0xf] %v534
      %567 = vst [vmem:[#allocation3 + $0x38] sm:$0xf] %v535
      %568 = vst [vmem:[#allocation3 + $0x3c] sm:$0xf] %v536
    $region25: #{conv_bn.1} parent=1 // pred_fallthru
      _
    // Predicated region
    $region26: #{conv_bn.1} parent=1 // pred_check
      _
    $region27: #{conv_bn.1} parent=1 // pred_check_branch
      %570 = sbr.rel (0) target = $region29
    $region28: #{conv_bn.1} parent=1 // pred_region
      %s572 = ssub.s32 1024, 1024
      %573 = vsyncadd [#allocation4], %s572
      %s574 = sshll.u32 [#allocation3], 4
      %s575 = int_to_ptr.vmem [resolvable:$true] %s574
      %580 = dma.vmem_to_hbm [thread:$0]  %s575, 1024, %s4, [#allocation4], 64, 64, 4
    $region29: #{conv_bn.1} parent=1 // pred_fallthru
      _
    // Predicated region
    $region30: #{conv_bn.1} parent=1 // pred_check
      _
    $region31: #{conv_bn.1} parent=1 // pred_check_branch
      %582 = sbr.rel (0) target = $region33
    $region32: #{conv_bn.1} parent=1 // pred_region
      %583 = dma.done [#allocation4], 1024
    $region33: #{conv_bn.1} parent=1 // pred_fallthru
      _
    %584 = vsyncpa [#allocation4], 1

</llo_original>
